<compile_context>
chip_gen: v6e
topology: v6e:2x2x1
jax: 0.10.0
libtpu: 0.0.40
codegen_flags: <defaults>
</compile_context>

<pallas_src>
import functools

import jax
import jax.numpy as jnp
from jax.experimental import pallas as pl
from jax.experimental.pallas import tpu as pltpu

_LANE = 128
_SUBLANE = 8
# Cap per-tile bytes: 2 input bufs + 2 output bufs (double buffering) x 4 MiB
# = 16 MiB resident, which fits the smallest scoped-VMEM budget across
# generations (v7x: 64 MiB physical / ~32 MiB scoped default).
_MAX_TILE_BYTES = 4 * 1024 * 1024


def _copy_kernel(x_ref, o_ref):
    # Identity copy of the current VMEM tile (the whole kernel is a DMA relay).
    o_ref[...] = x_ref[...]


def _flatten_new_shape(shape, start_dim, end_dim):
    end_dim = end_dim if end_dim >= 0 else len(shape) + end_dim
    shape1 = tuple(shape[:start_dim])
    shape2 = tuple(shape[end_dim + 1:])
    mid = functools.reduce(lambda a, b: a * b, shape[start_dim:end_dim + 1], 1)
    return shape1 + (mid,) + shape2


def _pick_lane_width(n):
    """Largest lane width (multiple of 128) dividing n, preferring views whose
    row count fills at least one full sublane group (>= 8 rows)."""
    candidates = (2048, 1024, 512, 256, 128)
    for c in candidates:
        if n % c == 0 and n // c >= _SUBLANE:
            return c
    for c in candidates:
        if n % c == 0:
            return c
    return None


def _materializing_copy(x_flat):
    """Explicit HBM->HBM identity copy via Pallas on a lane-dense 2D view,
    tiled in large contiguous row blocks bounded for the smallest VMEM (v7x)."""
    n = x_flat.size
    itemsize = jnp.dtype(x_flat.dtype).itemsize
    c = _pick_lane_width(n)

    if c is None:
        # Ragged total size (not a multiple of 128): single full-array block if
        # it is small enough, otherwise keep the metadata-only reshape.
        # TODO(synk): padded-DMA path for large sizes not divisible by 128.
        if n * itemsize > 2 * _MAX_TILE_BYTES:
            return x_flat
        return pl.pallas_call(
            _copy_kernel,
            out_shape=jax.ShapeDtypeStruct((1, n), x_flat.dtype),
            grid_spec=pltpu.PrefetchScalarGridSpec(
                num_scalar_prefetch=0,
                grid=(1,),
                in_specs=[pl.BlockSpec((1, n), lambda i: (0, 0))],
                out_specs=pl.BlockSpec((1, n), lambda i: (0, 0)),
            ),
            cost_estimate=pl.CostEstimate(
                flops=0, transcendentals=0, bytes_accessed=2 * n * itemsize),
        )(x_flat.reshape(1, n)).reshape(n)

    rows = n // c
    if rows >= _SUBLANE:
        # Multi-MiB contiguous row tiles, multiple of 8 sublanes, capped so
        # double-buffered in+out fits every generation's VMEM budget.
        tile_rows = (_MAX_TILE_BYTES // (c * itemsize)) // _SUBLANE * _SUBLANE
        tile_rows = max(_SUBLANE, tile_rows)
        tile_rows = min(tile_rows, (rows // _SUBLANE) * _SUBLANE)
    else:
        tile_rows = rows  # full leading extent (satisfies the (8,128) rule)

    grid = (pl.cdiv(rows, tile_rows),)
    x2d = x_flat.reshape(rows, c)

    y2d = pl.pallas_call(
        _copy_kernel,
        out_shape=jax.ShapeDtypeStruct((rows, c), x_flat.dtype),
        grid_spec=pltpu.PrefetchScalarGridSpec(
            num_scalar_prefetch=0,
            grid=grid,
            in_specs=[pl.BlockSpec((tile_rows, c), lambda i: (i, 0))],
            out_specs=pl.BlockSpec((tile_rows, c), lambda i: (i, 0)),
        ),
        compiler_params=pltpu.CompilerParams(
            dimension_semantics=("parallel",),  # megacore shards the 1-D grid
        ),
        cost_estimate=pl.CostEstimate(
            flops=0, transcendentals=0, bytes_accessed=2 * n * itemsize),
    )(x2d)
    return y2d.reshape(n)


def flatten_pallas(x, start_dim: int = 1, end_dim: int = -1,
                   materialize: bool = False):
    """Pallas equivalent of Flatten.forward.

    Default path: metadata-only reshape (no HBM traffic, no kernel) — flatten
    of a contiguous row-major array never moves data.  Set `materialize=True`
    to force an explicit Pallas copy kernel (benchmark / materialization use).
    """
    new_shape = _flatten_new_shape(x.shape, start_dim, end_dim)
    if not materialize:
        return x.reshape(new_shape)
    flat = _materializing_copy(x.reshape(-1))
    return flat.reshape(new_shape)


if __name__ == "__main__":
    key = jax.random.PRNGKey(0)
    # NCHW input consistent with a conv pipeline: batch=2, channels=4, 16x16.
    x = jax.random.normal(key, (2, 4, 16, 16), dtype=jnp.float32)
    ref = x.reshape(2, 4 * 16 * 16)

    # Fast (recommended) path: metadata-only reshape.
    out_fast = jax.block_until_ready(flatten_pallas(x, start_dim=1, end_dim=-1))
    assert out_fast.shape == (2, 1024), out_fast.shape
    assert out_fast.dtype == x.dtype
    assert bool(jnp.all(out_fast == ref))

    # Explicit Pallas copy path (exercises the kernel once).
    out_kernel = jax.block_until_ready(
        flatten_pallas(x, start_dim=1, end_dim=-1, materialize=True))
    assert out_kernel.shape == (2, 1024), out_kernel.shape
    assert out_kernel.dtype == x.dtype
    assert bool(jnp.all(out_kernel == ref))

    print("KERNEL_OK")
</pallas_src>

<mosaic_0001>
module attributes {stable_mosaic.version = 11 : i64} {
  func.func @_copy_kernel(%arg0: i32, %arg1: memref<8x256xf32, #tpu.memory_space<vmem>>, %arg2: memref<8x256xf32, #tpu.memory_space<vmem>>) attributes {dimension_semantics = [#tpu.dimension_semantics<parallel>], iteration_bounds = array<i64: 1>, scalar_prefetch = 0 : i64, scratch_operands = 0 : i64, tpu.core_type = #tpu.core_type<tc>, window_params = [{transform_indices = @transform_0, window_bounds = array<i64: 8, 256>}, {transform_indices = @transform_1, window_bounds = array<i64: 8, 256>}]} {
    %c0 = arith.constant 0 : index
    %c0_0 = arith.constant 0 : index
    %0 = vector.load %arg1[%c0, %c0_0] : memref<8x256xf32, #tpu.memory_space<vmem>>, vector<8x256xf32>
    %c0_1 = arith.constant 0 : index
    %c0_2 = arith.constant 0 : index
    %1 = vector.load %arg2[%c0_1, %c0_2] : memref<8x256xf32, #tpu.memory_space<vmem>>, vector<8x256xf32>
    tpu.vector_store %arg2[%c0_1, %c0_2], %0 {strides = array<i32>} : memref<8x256xf32, #tpu.memory_space<vmem>>, vector<8x256xf32>,
    return
  }
  func.func @transform_0(%arg0: i32) -> (i32, i32) {
    %c0_i32 = arith.constant 0 : i32
    %c0_i32_0 = arith.constant 0 : i32
    return %arg0, %c0_i32 : i32, i32
  }
  func.func @transform_1(%arg0: i32) -> (i32, i32) {
    %c0_i32 = arith.constant 0 : i32
    %c0_i32_0 = arith.constant 0 : i32
    return %arg0, %c0_i32 : i32, i32
  }
}

</mosaic_0001>

<llo_original>
// kernel: tpu_custom_call.1
$region0: #{tpu_custom_call.1}
  #allocation0 [shape = 'u32[]', space=smem, size = 0x4, offset = 0x4, fixed_abs, tag = 'smem constant byte address 0x4 - core index']
  #allocation1 [shape = 'u32[144,128]{1,0:T(1,128)}', space=vmem, size = 0x12000, scoped, tag = 'internal scratch']
  %s0 = inlined_call_operand.hbm [shape: f32[8,256], index: 0, kind: input, shape index: {}]
  %s1 = inlined_call_operand.hbm [shape: f32[8,256], index: 1, kind: output, shape index: {}]
  %s2 = sld [smem:[#allocation0]]
  $region18: #{tpu_custom_call.1} parent=0
    _
  %s4 = ssub.s32 1, %s2
  %s5 = scalar_select 0, %s4, %s2
  $region1: #{tpu_custom_call.1} parent=0
    #allocation2 [shape = 'u8[8192]{0}', space=vmem, size = 0x2000, scoped, tag = 'input window, operand 0, single buffered']
    #allocation3 [shape = 's32[1]{0}', space=sflag, size = 0x4, scoped, tag = 'scoped memory for tpu_custom_call.1']
    #allocation4 [shape = 's32[1]{0}', space=sflag, size = 0x4, scoped, tag = 'scoped memory for tpu_custom_call.1']
    #allocation5 [shape = 'u8[8192]{0}', space=vmem, size = 0x2000, scoped, tag = 'output window, operand 0, single buffered']
    %6 = vsyncpa [#allocation3], 0
    %7 = vsyncpa [#allocation4], 0
    // Predicated region
    $region2: #{tpu_custom_call.1} parent=1 // pred_check
      _
    $region3: #{tpu_custom_call.1} parent=1 // pred_check_branch
      %9 = sbr.rel (0) target = $region5
    $region4: #{tpu_custom_call.1} parent=1 // pred_region
      %s11 = ssub.s32 256, 256
      %12 = vsyncadd [#allocation3], %s11
      %s14 = sshll.u32 [#allocation2], 4
      %s15 = int_to_ptr.vmem [resolvable:$true] %s14
      %17 = dma.hbm_to_vmem [thread:$0]  %s0, 256, %s15, [#allocation3]
    $region5: #{tpu_custom_call.1} parent=1 // pred_fallthru
      _
    // Predicated region
    $region6: #{tpu_custom_call.1} parent=1 // pred_check
      _
    $region7: #{tpu_custom_call.1} parent=1 // pred_check_branch
      %19 = sbr.rel (0) target = $region9
    $region8: #{tpu_custom_call.1} parent=1 // pred_region
      %20 = dma.done [#allocation3], 256
    $region9: #{tpu_custom_call.1} parent=1 // pred_fallthru
      _
    %v21 = vld [vmem:[#allocation2] sm:$0xff]
    %v22 = vld [vmem:[#allocation2 + $0x8] sm:$0xff]
    %23 = vst [vmem:[#allocation5] sm:$0xff] %v21
    %24 = vst [vmem:[#allocation5 + $0x8] sm:$0xff] %v22
    // Predicated region
    $region10: #{tpu_custom_call.1} parent=1 // pred_check
      _
    $region11: #{tpu_custom_call.1} parent=1 // pred_check_branch
      %26 = sbr.rel (0) target = $region13
    $region12: #{tpu_custom_call.1} parent=1 // pred_region
      %s28 = ssub.s32 256, 256
      %29 = vsyncadd [#allocation4], %s28
      %s31 = sshll.u32 [#allocation5], 4
      %s32 = int_to_ptr.vmem [resolvable:$true] %s31
      %34 = dma.vmem_to_hbm [thread:$0]  %s32, 256, %s1, [#allocation4]
    $region13: #{tpu_custom_call.1} parent=1 // pred_fallthru
      _
    // Predicated region
    $region14: #{tpu_custom_call.1} parent=1 // pred_check
      _
    $region15: #{tpu_custom_call.1} parent=1 // pred_check_branch
      %36 = sbr.rel (0) target = $region17
    $region16: #{tpu_custom_call.1} parent=1 // pred_region
      %37 = dma.done [#allocation4], 256
    $region17: #{tpu_custom_call.1} parent=1 // pred_fallthru
      _
    %38 = vsyncpa [#allocation3], 1
    %39 = vsyncpa [#allocation4], 1

</llo_original>
